<compile_context>
chip_gen: v5e
topology: v5e:2x2
jax: 0.10.0
libtpu: 0.0.40
codegen_flags: <defaults>
</compile_context>

<pallas_src>
from functools import partial

import jax
import jax.numpy as jnp
from jax.experimental import pallas as pl
from jax.experimental.pallas import tpu as pltpu


def _round_up(x, m):
    return ((x + m - 1) // m) * m


def _round_down(x, m):
    return (x // m) * m


def _device_kind():
    try:
        return jax.devices()[0].device_kind.lower()
    except Exception:
        return ""


def _model1_kernel(params_ref, x_ref, w_ref, y_ref, pred_ref, loss_ref, *, n_rows):
    p = pl.program_id(0)           # "parallel" chunk axis (megacore on v7x)
    j = pl.program_id(1)           # "arbitrary" inner axis (loss accumulation)
    s = pl.num_programs(1)
    tn = pred_ref.shape[1]

    # Scalars: read once from SMEM (derived constants precomputed in wrapper).
    p1 = params_ref[0]
    q1 = params_ref[1]             # 1 - p1
    a = params_ref[2]
    b = params_ref[3]
    c1 = params_ref[4]             # 2 * (1 + alpha)
    c2 = params_ref[5]             # -p1 * (1 - p1) * alpha**2

    # Lane-dense matvec: (1, d) x (tn, d)^T -> (1, tn)   (q @ k^T style).
    xw = jax.lax.dot_general(
        w_ref[...], x_ref[...],
        dimension_numbers=(((1,), (1,)), ((), ())),
        preferred_element_type=jnp.float32)

    yb = (y_ref[...] > 0.0).astype(jnp.float32)        # (1, tn)
    one_m_yb = 1.0 - yb

    da = xw - a
    db = xw - b
    loss = q1 * da * da * yb
    loss = loss + p1 * db * db * one_m_yb
    loss = loss + c1 * (p1 * xw * one_m_yb - q1 * xw * yb)
    loss = loss + c2

    # Mask rows past N (ragged last tile reads unspecified values; clamped
    # fully-OOB tiles re-read the last valid tile -- both are zeroed here).
    row = (p * s + j) * tn + jax.lax.broadcasted_iota(jnp.int32, (1, tn), 1)
    loss = jnp.where(row < n_rows, loss, 0.0)

    # Lane-dense (unmasked) prediction store.
    pred_ref[...] = xw

    # Per-chunk running loss sum kept lane-dense directly in the resident
    # output block (same block index across the inner "arbitrary" axis).
    @pl.when(j == 0)
    def _():
        loss_ref[...] = jnp.zeros_like(loss_ref)

    loss_ref[...] += loss


def model1_forward(X, y, w, alpha, a, b, *, tn=None, num_chunks=None,
                   stream_dtype=None):
    """Matches Model1.forward: returns (pred, loss)."""
    N, d = X.shape

    kind = _device_kind()
    is_v7 = "v7" in kind
    if num_chunks is None:
        num_chunks = 2 if is_v7 else 1      # only v7x has 2 TCs per chip
    P_req = max(int(num_chunks), 1)

    # VMEM footprint of an X tile uses the lane-padded width.
    d_pad = _round_up(d, 128)
    x_item = jnp.dtype(stream_dtype or jnp.float32).itemsize
    tile_target = (2 << 20) if is_v7 else (4 << 20)      # per-X-tile VMEM bytes
    vmem_cap = (48 << 20) if is_v7 else (100 << 20)      # scoped VMEM ceiling

    if tn is None:
        tn_target = _round_down(tile_target // (x_item * d_pad), 128)
        tn_vmem = _round_down((vmem_cap // 2) // (2 * x_item * d_pad), 128)
        tn = min(max(tn_target, 128), max(tn_vmem, 128))
    tn = int(tn)
    tn = min(tn, _round_up(pl.cdiv(N, P_req), 128))      # don't over-tile small N
    tn = max(128, _round_down(tn, 128))

    T = pl.cdiv(N, tn)                 # number of tiles that actually touch X
    P = max(1, min(P_req, T))          # no empty chunks
    S = pl.cdiv(N, P * tn)             # inner steps per chunk
    n_tiles = P * S                    # may exceed T; OOB tiles clamped+masked
    n_pad = n_tiles * tn

    # p1 uses the *raw* y values (before binarization), as in the PyTorch code.
    p1 = jnp.sum(y.astype(jnp.float32)) / N
    alpha = jnp.asarray(alpha, jnp.float32)
    a = jnp.asarray(a, jnp.float32)
    b = jnp.asarray(b, jnp.float32)
    params = jnp.stack([
        p1, 1.0 - p1, a, b,
        2.0 * (1.0 + alpha),
        -p1 * (1.0 - p1) * alpha * alpha,
    ]).astype(jnp.float32)

    # X is NOT padded/copied; only the tiny y vector is padded (O(N) bytes).
    xdt = stream_dtype if stream_dtype is not None else jnp.float32
    Xf = X.astype(xdt)
    wf = w.astype(xdt).reshape(1, d)
    y2 = jnp.pad(y.astype(jnp.float32).reshape(N), (0, n_pad - N))
    y2 = y2.reshape(n_tiles, tn)                        # lane-dense y tiles

    # VMEM budget: double-buffered X tile (lane padded) + y/pred/loss row
    # blocks (sublane padded to 8) + resident w + slack.
    x_tile_vmem = tn * d_pad * x_item
    row_block = 8 * tn * 4
    vmem_needed = (2 * x_tile_vmem + 2 * 3 * row_block
                   + 2 * 8 * d_pad * x_item + (2 << 20))
    vmem_limit = int(min(vmem_cap, max(vmem_needed, 16 << 20)))

    last_tile = T - 1                                   # static Python int

    pred, loss_parts = pl.pallas_call(
        partial(_model1_kernel, n_rows=N),
        out_shape=(
            jax.ShapeDtypeStruct((n_tiles, tn), jnp.float32),  # pred (lane dense)
            jax.ShapeDtypeStruct((P, tn), jnp.float32),        # per-chunk loss sums
        ),
        grid_spec=pltpu.PrefetchScalarGridSpec(
            num_scalar_prefetch=0,
            grid=(P, S),
            in_specs=[
                pl.BlockSpec(memory_space=pltpu.MemorySpace.SMEM),   # params
                # X row tile; clamp block index so no tile starts past N.
                pl.BlockSpec((tn, d),
                             lambda p, j: (jnp.minimum(p * S + j, last_tile), 0)),
                pl.BlockSpec((1, d), lambda p, j: (0, 0)),           # w (resident)
                pl.BlockSpec((1, tn), lambda p, j: (p * S + j, 0)),  # y tile
            ],
            out_specs=[
                pl.BlockSpec((1, tn), lambda p, j: (p * S + j, 0)),  # pred tile
                pl.BlockSpec((1, tn), lambda p, j: (p, 0)),          # loss acc
            ],
        ),
        compiler_params=pltpu.CompilerParams(
            dimension_semantics=("parallel", "arbitrary"),
            vmem_limit_bytes=vmem_limit,
        ),
    )(params, Xf, wf, y2)

    pred = pred.reshape(n_pad)[:N]
    loss = jnp.sum(loss_parts) / N                     # .mean() over N rows
    return pred, loss


def _reference(X, y, w, alpha, a, b):
    N = X.shape[0]
    Xf = X.astype(jnp.float32)
    yf = y.astype(jnp.float32)
    p1 = jnp.sum(yf) / N
    Xw = Xf @ w.astype(jnp.float32)
    yb = (yf > 0).astype(jnp.float32)
    loss = (1.0 - p1) * (Xw - a) ** 2 * yb
    loss += p1 * (Xw - b) ** 2 * (1.0 - yb)
    loss += 2.0 * (1.0 + alpha) * (p1 * Xw * (1.0 - yb) - (1.0 - p1) * Xw * yb)
    loss += -p1 * (1.0 - p1) * alpha ** 2
    return Xw, jnp.mean(loss)


if __name__ == "__main__":
    key = jax.random.PRNGKey(0)
    cases = [
        (16, 32, {}),                                 # tiny: single partial tile
        (300, 32, {}),                                # ragged edge tile
        (1037, 48, {}),                               # default config
        (1037, 48, dict(num_chunks=2, tn=128)),       # exercises OOB-tile clamp
        (513, 200, dict(num_chunks=2)),               # d > 128, two chunks
    ]
    for (N, d, kwargs) in cases:
        kx, ky, kwt, key = jax.random.split(key, 4)
        X = jax.random.normal(kx, (N, d), dtype=jnp.float32)
        # y: raw values (mix of signs), binarized in-kernel for the loss terms.
        y = jax.random.normal(ky, (N,), dtype=jnp.float32)
        w = jax.random.normal(kwt, (d,), dtype=jnp.float32)
        alpha = jnp.float32(0.1)
        a = jnp.float32(0.0)
        b = jnp.float32(0.0)

        pred, loss = model1_forward(X, y, w, alpha, a, b, **kwargs)
        jax.block_until_ready((pred, loss))

        pred_ref, loss_ref = _reference(X, y, w, alpha, a, b)
        assert pred.shape == (N,)
        assert jnp.allclose(pred, pred_ref, atol=1e-4, rtol=1e-4)
        assert jnp.allclose(loss, loss_ref, atol=1e-3, rtol=1e-4)

    print("KERNEL_OK")
</pallas_src>

<mosaic_0001>
module attributes {stable_mosaic.version = 11 : i64} {
  func.func @_model1_kernel(%arg0: i32, %arg1: i32, %arg2: memref<6xf32, #tpu.memory_space<smem>>, %arg3: memref<128x32xf32, #tpu.memory_space<vmem>>, %arg4: memref<1x32xf32, #tpu.memory_space<vmem>>, %arg5: memref<1x128xf32, #tpu.memory_space<vmem>>, %arg6: memref<1x128xf32, #tpu.memory_space<vmem>>, %arg7: memref<1x128xf32, #tpu.memory_space<vmem>>) attributes {dimension_semantics = [#tpu.dimension_semantics<parallel>, #tpu.dimension_semantics<arbitrary>], iteration_bounds = array<i64: 1, 1>, scalar_prefetch = 0 : i64, scratch_operands = 0 : i64, tpu.core_type = #tpu.core_type<tc>, window_params = [{transform_indices = @transform_0, window_bounds = array<i64: 6>}, {transform_indices = @transform_1, window_bounds = array<i64: 128, 32>}, {pipeline_mode = #tpu.pipeline_mode<synchronous>, transform_indices = @transform_2, window_bounds = array<i64: 1, 32>}, {transform_indices = @transform_3, window_bounds = array<i64: 1, 128>}, {transform_indices = @transform_4, window_bounds = array<i64: 1, 128>}, {transform_indices = @transform_5, window_bounds = array<i64: 1, 128>}]} {
    %c0 = arith.constant 0 : index
    %0 = memref.load %arg2[%c0] : memref<6xf32, #tpu.memory_space<smem>>
    %c1 = arith.constant 1 : index
    %1 = memref.load %arg2[%c1] : memref<6xf32, #tpu.memory_space<smem>>
    %c2 = arith.constant 2 : index
    %2 = memref.load %arg2[%c2] : memref<6xf32, #tpu.memory_space<smem>>
    %c3 = arith.constant 3 : index
    %3 = memref.load %arg2[%c3] : memref<6xf32, #tpu.memory_space<smem>>
    %c4 = arith.constant 4 : index
    %4 = memref.load %arg2[%c4] : memref<6xf32, #tpu.memory_space<smem>>
    %c5 = arith.constant 5 : index
    %5 = memref.load %arg2[%c5] : memref<6xf32, #tpu.memory_space<smem>>
    %c0_0 = arith.constant 0 : index
    %c0_1 = arith.constant 0 : index
    %6 = vector.load %arg4[%c0_0, %c0_1] : memref<1x32xf32, #tpu.memory_space<vmem>>, vector<1x32xf32>
    %c0_2 = arith.constant 0 : index
    %c0_3 = arith.constant 0 : index
    %7 = vector.load %arg3[%c0_2, %c0_3] : memref<128x32xf32, #tpu.memory_space<vmem>>, vector<128x32xf32>
    %cst = arith.constant dense<0.000000e+00> : vector<1x128xf32>
    %8 = tpu.matmul %6, %7, %cst {dimension_numbers = #tpu.dot_dimension_numbers<[1], [1], [0], [0], [0, 0, 1, 0], [], []>} : vector<1x32xf32>, vector<128x32xf32>, vector<1x128xf32> -> vector<1x128xf32>
    %c0_4 = arith.constant 0 : index
    %c0_5 = arith.constant 0 : index
    %9 = vector.load %arg5[%c0_4, %c0_5] : memref<1x128xf32, #tpu.memory_space<vmem>>, vector<1x128xf32>
    %cst_6 = arith.constant 0.000000e+00 : f32
    %10 = vector.broadcast %cst_6 : f32 to vector<1x128xf32>
    %11 = arith.cmpf ogt, %9, %10 : vector<1x128xf32>
    %12 = arith.extui %11 : vector<1x128xi1> to vector<1x128xi32>
    %13 = arith.sitofp %12 : vector<1x128xi32> to vector<1x128xf32>
    %cst_7 = arith.constant 1.000000e+00 : f32
    %14 = vector.broadcast %cst_7 : f32 to vector<1x128xf32>
    %15 = arith.subf %14, %13 : vector<1x128xf32>
    %16 = vector.broadcast %2 : f32 to vector<1x128xf32>
    %17 = arith.subf %8, %16 : vector<1x128xf32>
    %18 = vector.broadcast %3 : f32 to vector<1x128xf32>
    %19 = arith.subf %8, %18 : vector<1x128xf32>
    %20 = vector.broadcast %1 : f32 to vector<1x128xf32>
    %21 = arith.mulf %20, %17 : vector<1x128xf32>
    %22 = arith.mulf %21, %17 : vector<1x128xf32>
    %23 = arith.mulf %22, %13 : vector<1x128xf32>
    %24 = vector.broadcast %0 : f32 to vector<1x128xf32>
    %25 = arith.mulf %24, %19 : vector<1x128xf32>
    %26 = arith.mulf %25, %19 : vector<1x128xf32>
    %27 = arith.mulf %26, %15 : vector<1x128xf32>
    %28 = arith.addf %23, %27 : vector<1x128xf32>
    %29 = vector.broadcast %0 : f32 to vector<1x128xf32>
    %30 = arith.mulf %29, %8 : vector<1x128xf32>
    %31 = arith.mulf %30, %15 : vector<1x128xf32>
    %32 = vector.broadcast %1 : f32 to vector<1x128xf32>
    %33 = arith.mulf %32, %8 : vector<1x128xf32>
    %34 = arith.mulf %33, %13 : vector<1x128xf32>
    %35 = arith.subf %31, %34 : vector<1x128xf32>
    %36 = vector.broadcast %4 : f32 to vector<1x128xf32>
    %37 = arith.mulf %36, %35 : vector<1x128xf32>
    %38 = arith.addf %28, %37 : vector<1x128xf32>
    %39 = vector.broadcast %5 : f32 to vector<1x128xf32>
    %40 = arith.addf %38, %39 : vector<1x128xf32>
    %c1_i32 = arith.constant 1 : i32
    %41 = arith.muli %arg0, %c1_i32 : i32
    %42 = arith.addi %41, %arg1 : i32
    %c128_i32 = arith.constant 128 : i32
    %43 = arith.muli %42, %c128_i32 : i32
    %44 = tpu.iota {dimensions = array<i32: 1>} : vector<1x128xi32>
    %45 = vector.broadcast %43 : i32 to vector<1x128xi32>
    %46 = arith.addi %45, %44 : vector<1x128xi32>
    %c16_i32 = arith.constant 16 : i32
    %47 = vector.broadcast %c16_i32 : i32 to vector<1x128xi32>
    %48 = arith.cmpi slt, %46, %47 : vector<1x128xi32>
    %cst_8 = arith.constant 0.000000e+00 : f32
    %49 = vector.broadcast %cst_8 : f32 to vector<1x128xf32>
    %50 = arith.select %48, %40, %49 : vector<1x128xi1>, vector<1x128xf32>
    %c0_9 = arith.constant 0 : index
    %c0_10 = arith.constant 0 : index
    %51 = vector.load %arg6[%c0_9, %c0_10] : memref<1x128xf32, #tpu.memory_space<vmem>>, vector<1x128xf32>
    tpu.vector_store %arg6[%c0_9, %c0_10], %8 {strides = array<i32>} : memref<1x128xf32, #tpu.memory_space<vmem>>, vector<1x128xf32>,
    %c0_i32 = arith.constant 0 : i32
    %52 = arith.cmpi eq, %arg1, %c0_i32 : i32
    %53 = arith.extui %52 : i1 to i32
    %c0_i32_11 = arith.constant 0 : i32
    %54 = arith.cmpi ne, %53, %c0_i32_11 : i32
    scf.if %54 {
      %cst_16 = arith.constant 0.000000e+00 : f32
      %58 = vector.broadcast %cst_16 : f32 to vector<1x128xf32>
      %c0_17 = arith.constant 0 : index
      %c0_18 = arith.constant 0 : index
      %59 = vector.load %arg7[%c0_17, %c0_18] : memref<1x128xf32, #tpu.memory_space<vmem>>, vector<1x128xf32>
      tpu.vector_store %arg7[%c0_17, %c0_18], %58 {strides = array<i32>} : memref<1x128xf32, #tpu.memory_space<vmem>>, vector<1x128xf32>,
    } else {
    }
    %c0_12 = arith.constant 0 : index
    %c0_13 = arith.constant 0 : index
    %55 = vector.load %arg7[%c0_12, %c0_13] : memref<1x128xf32, #tpu.memory_space<vmem>>, vector<1x128xf32>
    %56 = arith.addf %55, %50 : vector<1x128xf32>
    %c0_14 = arith.constant 0 : index
    %c0_15 = arith.constant 0 : index
    %57 = vector.load %arg7[%c0_14, %c0_15] : memref<1x128xf32, #tpu.memory_space<vmem>>, vector<1x128xf32>
    tpu.vector_store %arg7[%c0_14, %c0_15], %56 {strides = array<i32>} : memref<1x128xf32, #tpu.memory_space<vmem>>, vector<1x128xf32>,
    return
  }
  func.func @transform_0(%arg0: i32, %arg1: i32) -> i32 {
    %c0_i32 = arith.constant 0 : i32
    %c0_i32_0 = arith.constant 0 : i32
    return %c0_i32 : i32
  }
  func.func @transform_1(%arg0: i32, %arg1: i32) -> (i32, i32) {
    %c1_i32 = arith.constant 1 : i32
    %0 = arith.muli %arg0, %c1_i32 : i32
    %1 = arith.addi %0, %arg1 : i32
    %c0_i32 = arith.constant 0 : i32
    %2 = arith.minsi %1, %c0_i32 : i32
    %c0_i32_0 = arith.constant 0 : i32
    %c0_i32_1 = arith.constant 0 : i32
    return %2, %c0_i32_0 : i32, i32
  }
  func.func @transform_2(%arg0: i32, %arg1: i32) -> (i32, i32) {
    %c0_i32 = arith.constant 0 : i32
    %c0_i32_0 = arith.constant 0 : i32
    %c0_i32_1 = arith.constant 0 : i32
    return %c0_i32, %c0_i32_0 : i32, i32
  }
  func.func @transform_3(%arg0: i32, %arg1: i32) -> (i32, i32) {
    %c1_i32 = arith.constant 1 : i32
    %0 = arith.muli %arg0, %c1_i32 : i32
    %1 = arith.addi %0, %arg1 : i32
    %c0_i32 = arith.constant 0 : i32
    %c0_i32_0 = arith.constant 0 : i32
    return %1, %c0_i32 : i32, i32
  }
  func.func @transform_4(%arg0: i32, %arg1: i32) -> (i32, i32) {
    %c1_i32 = arith.constant 1 : i32
    %0 = arith.muli %arg0, %c1_i32 : i32
    %1 = arith.addi %0, %arg1 : i32
    %c0_i32 = arith.constant 0 : i32
    %c0_i32_0 = arith.constant 0 : i32
    return %1, %c0_i32 : i32, i32
  }
  func.func @transform_5(%arg0: i32, %arg1: i32) -> (i32, i32) {
    %c0_i32 = arith.constant 0 : i32
    %c0_i32_0 = arith.constant 0 : i32
    return %arg0, %c0_i32 : i32, i32
  }
}

</mosaic_0001>

<llo_original>
// kernel: tpu_custom_call.1
$region0: #{tpu_custom_call.1}
  #allocation0 [shape = 'u32[]', space=smem, size = 0x4, offset = 0x4, fixed_abs, tag = 'smem constant byte address 0x4 - core index']
  #allocation1 [shape = 'u32[72,128]{1,0:T(1,128)}', space=vmem, size = 0x9000, scoped, tag = 'internal scratch']
  %s0 = inlined_call_operand.hbm [shape: f32[6], index: 0, kind: input, shape index: {}]
  %s1 = inlined_call_operand.hbm [shape: f32[16,32], index: 1, kind: input, shape index: {}]
  %s2 = inlined_call_operand.vmem [shape: f32[1,32], index: 2, kind: input, shape index: {}]
  %s3 = inlined_call_operand.vmem [shape: f32[1,128], index: 3, kind: input, shape index: {}]
  %s4 = inlined_call_operand.hbm [shape: f32[1,128], index: 4, kind: output, shape index: {0}]
  %s5 = inlined_call_operand.hbm [shape: f32[1,128], index: 5, kind: output, shape index: {1}]
  %6 = xla_tuple %s4, %s5
  %s7 = sld [smem:[#allocation0]]
  $region46: #{tpu_custom_call.1} parent=0
    _
  %s9 = ssub.s32 1, %s7
  %s10 = scalar_select 0, %s9, %s7
  $region1: #{tpu_custom_call.1} parent=0
    #allocation2 [shape = 'u8[512]{0}', space=smem, size = 0x200, scoped, tag = 'input window, operand 0, single buffered']
    #allocation3 [shape = 's32[1]{0}', space=sflag, size = 0x4, scoped, tag = 'scoped memory for tpu_custom_call.1']
    #allocation4 [shape = 's32[1]{0}', space=sflag, size = 0x4, scoped, tag = 'scoped memory for tpu_custom_call.1']
    #allocation5 [shape = 's32[1]{0}', space=sflag, size = 0x4, scoped, tag = 'scoped memory for tpu_custom_call.1']
    #allocation6 [shape = 'u8[65536]{0}', space=vmem, size = 0x10000, scoped, tag = 'input window, operand 1, single buffered']
    #allocation7 [shape = 'u8[512]{0}', space=vmem, size = 0x400, scoped, tag = 'output window, operand 0, single buffered']
    #allocation8 [shape = 'u8[512]{0}', space=vmem, size = 0x400, scoped, tag = 'output window, operand 1, single buffered']
    #allocation9 [shape = 's32[1]{0}', space=sflag, size = 0x4, scoped, tag = 'scoped memory for tpu_custom_call.1']
    %11 = vsyncpa [#allocation5], 0
    %12 = vsyncpa [#allocation3], 0
    %13 = vsyncpa [#allocation4], 0
    %14 = vsyncpa [#allocation9], 0
    // Predicated region
    $region2: #{tpu_custom_call.1} parent=1 // pred_check
      _
    $region3: #{tpu_custom_call.1} parent=1 // pred_check_branch
      %16 = sbr.rel (0) target = $region5
    $region4: #{tpu_custom_call.1} parent=1 // pred_region
      %18 = vsyncadd [#allocation5], 0
      %s20 = sshll.u32 %s0, 4
      %s21 = int_to_ptr.hbm [resolvable:$true] %s20
      %23 = dma.hbm_to_smem %s21, 16, [#allocation2], [#allocation5]
    $region5: #{tpu_custom_call.1} parent=1 // pred_fallthru
      _
    // Predicated region
    $region6: #{tpu_custom_call.1} parent=1 // pred_check
      _
    $region7: #{tpu_custom_call.1} parent=1 // pred_check_branch
      %25 = sbr.rel (0) target = $region9
    $region8: #{tpu_custom_call.1} parent=1 // pred_region
      %s26 = sadd.s32 0, 0
      %p27 = scmp.lt.s32.totalorder %s26, 0
      %s28 = scalar_select %p27, %s26, 0
      %s29 = smul.u32 16, %s28
      %s30 = ssub.s32 2, %s29
      %s31 = smul.u32 8, %s30
      %s32 = ssub.s32 128, %s31
      %s33 = sshll.u32 %s32, 4
      %34 = vsyncadd [#allocation3], %s33
      %p35 = scmp.ne.s32.totalorder 0, %s31
      %s36 = smul.addr %s29, 8
      %s37 = scalar_lea.hbm %s1, %s36
      %s38 = smul.u32 8, %s30
      %s39 = sshll.u32 %s37, 4
      %s40 = int_to_ptr.hbm [resolvable:$true] %s39
      %s41 = sshll.u32 [#allocation6], 4
      %s42 = int_to_ptr.vmem [resolvable:$true] %s41
      %s43 = sshll.u32 %s38, 4
      %47 = dma.hbm_to_vmem [thread:$0]  (%p35), %s40, %s43, %s42, [#allocation3], 128, 128, 8
    $region9: #{tpu_custom_call.1} parent=1 // pred_fallthru
      _
    // Predicated region
    $region10: #{tpu_custom_call.1} parent=1 // pred_check
      _
    $region11: #{tpu_custom_call.1} parent=1 // pred_check_branch
      %49 = sbr.rel (0) target = $region13
    $region12: #{tpu_custom_call.1} parent=1 // pred_region
      _
    $region13: #{tpu_custom_call.1} parent=1 // pred_fallthru
      _
    // Predicated region
    $region14: #{tpu_custom_call.1} parent=1 // pred_check
      _
    $region15: #{tpu_custom_call.1} parent=1 // pred_check_branch
      %51 = sbr.rel (0) target = $region17
    $region16: #{tpu_custom_call.1} parent=1 // pred_region
      %s52 = sadd.s32 0, 0
      %p53 = scmp.lt.s32.totalorder %s52, 0
      %s54 = scalar_select %p53, %s52, 0
      %s55 = scalar_lea.vmem %s3, %s54
      %s56 = sadd.s32 0, 0
    $region17: #{tpu_custom_call.1} parent=1 // pred_fallthru
      _
    // Predicated region
    $region18: #{tpu_custom_call.1} parent=1 // pred_check
      _
    $region19: #{tpu_custom_call.1} parent=1 // pred_check_branch
      %58 = sbr.rel (0) target = $region21
    $region20: #{tpu_custom_call.1} parent=1 // pred_region
      %60 = dma.done [#allocation5], 16
    $region21: #{tpu_custom_call.1} parent=1 // pred_fallthru
      _
    // Predicated region
    $region22: #{tpu_custom_call.1} parent=1 // pred_check
      _
    $region23: #{tpu_custom_call.1} parent=1 // pred_check_branch
      %62 = sbr.rel (0) target = $region25
    $region24: #{tpu_custom_call.1} parent=1 // pred_region
      %64 = dma.done [#allocation3], 2048
    $region25: #{tpu_custom_call.1} parent=1 // pred_fallthru
      _
    %65 = sfence
    %s66 = sadd.s32 0, 0
    %p67 = scmp.lt.s32.totalorder %s66, 0
    %s68 = scalar_select %p67, %s66, 0
    %s69 = scalar_lea.vmem %s3, %s68
    %s70 = sadd.s32 0, 0
    %p71 = scmp.lt.s32.totalorder %s70, 0
    %s72 = scalar_select %p71, %s70, 0
    %s73 = smul.u32 16, %s72
    %s74 = ssub.s32 2, %s73
    %s75 = smul.u32 8, %s74
    %s76 = sadd.s32 0, 0
    %p77 = scmp.lt.s32.totalorder %s76, 0
    %s78 = scalar_select %p77, %s76, 0
    %s79 = scalar_lea.vmem %s3, %s78
    %s80 = sadd.s32 0, 0
    %s81 = sadd.s32 0, 0
    %s82 = sld [smem:[#allocation2]]
    %s83 = sld [smem:[#allocation2 + $0x1]]
    %s84 = sld [smem:[#allocation2 + $0x2]]
    %s85 = sld [smem:[#allocation2 + $0x3]]
    %s86 = sld [smem:[#allocation2 + $0x4]]
    %s87 = sld [smem:[#allocation2 + $0x5]]
    %v88 = vld [vmem:[%s2] sm:$0x1]
    %v89 = vld [vmem:[#allocation6] sm:$0xff]
    %v90 = vld [vmem:[#allocation6 + $0x8] sm:$0xff]
    %v91 = vld [vmem:[#allocation6 + $0x10] sm:$0xff]
    %v92 = vld [vmem:[#allocation6 + $0x18] sm:$0xff]
    %v93 = vld [vmem:[#allocation6 + $0x20] sm:$0xff]
    %v94 = vld [vmem:[#allocation6 + $0x28] sm:$0xff]
    %v95 = vld [vmem:[#allocation6 + $0x30] sm:$0xff]
    %v96 = vld [vmem:[#allocation6 + $0x38] sm:$0xff]
    %v97 = vld [vmem:[#allocation6 + $0x40] sm:$0xff]
    %v98 = vld [vmem:[#allocation6 + $0x48] sm:$0xff]
    %v99 = vld [vmem:[#allocation6 + $0x50] sm:$0xff]
    %v100 = vld [vmem:[#allocation6 + $0x58] sm:$0xff]
    %v101 = vld [vmem:[#allocation6 + $0x60] sm:$0xff]
    %v102 = vld [vmem:[#allocation6 + $0x68] sm:$0xff]
    %v103 = vld [vmem:[#allocation6 + $0x70] sm:$0xff]
    %v104 = vld [vmem:[#allocation6 + $0x78] sm:$0xff]
    %vm105 = vcmask 261120
    %v107 = vsel %vm105, %v88, 0
    %v110 = vsel %vm105, %v89, 0
    %v113 = vsel %vm105, %v90, 0
    %v116 = vsel %vm105, %v91, 0
    %v119 = vsel %vm105, %v92, 0
    %v122 = vsel %vm105, %v93, 0
    %v125 = vsel %vm105, %v94, 0
    %v128 = vsel %vm105, %v95, 0
    %v131 = vsel %vm105, %v96, 0
    %v134 = vsel %vm105, %v97, 0
    %v137 = vsel %vm105, %v98, 0
    %v140 = vsel %vm105, %v99, 0
    %v143 = vsel %vm105, %v100, 0
    %v146 = vsel %vm105, %v101, 0
    %v149 = vsel %vm105, %v102, 0
    %v152 = vsel %vm105, %v103, 0
    %v155 = vsel %vm105, %v104, 0
    %157 = vmatpush.xpose.msra.mxu0 %v155
    %158 = vmatpush.xpose.msra.mxu0 %v152
    %159 = vmatpush.xpose.msra.mxu0 %v149
    %160 = vmatpush.xpose.msra.mxu0 %v146
    %161 = vmatpush.xpose.msra.mxu0 %v143
    %162 = vmatpush.xpose.msra.mxu0 %v140
    %163 = vmatpush.xpose.msra.mxu0 %v137
    %164 = vmatpush.xpose.msra.mxu0 %v134
    %165 = vmatpush.xpose.msra.mxu0 %v131
    %166 = vmatpush.xpose.msra.mxu0 %v128
    %167 = vmatpush.xpose.msra.mxu0 %v125
    %168 = vmatpush.xpose.msra.mxu0 %v122
    %169 = vmatpush.xpose.msra.mxu0 %v119
    %170 = vmatpush.xpose.msra.mxu0 %v116
    %171 = vmatpush.xpose.msra.mxu0 %v113
    %172 = vmatpush.xpose.msra.mxu0 %v110
    %173 = vmatmul.f32.gmra.mxu0 %v107
    %v174 = vpop.f32.mrf.mxu0
    %v175 = vadd.f32 0.0, %v174
    %176 = vdwg.mxu0
    %v177 = vld [vmem:[%s79] sm:$0x1]
    %vm178 = vcmp.gt.f32.partialorder %v177, 0.0
    %v179 = vsel %vm178, 1, 0
    %v180 = vcvt.s32.f32 %v179
    %v181 = vsub.f32 1.0, %v180
    %v182 = vstv %s84
    %v183 = vsub.f32 %v175, %v182
    %v184 = vstv %s85
    %v185 = vsub.f32 %v175, %v184
    %v186 = vstv %s83
    %v187 = vmul.f32 %v186, %v183
    %v188 = vmul.f32 %v187, %v183
    %v189 = vmul.f32 %v188, %v180
    %v190 = vstv %s82
    %v191 = vmul.f32 %v190, %v185
    %v192 = vmul.f32 %v191, %v185
    %v193 = vmul.f32 %v192, %v181
    %v194 = vadd.f32 %v189, %v193
    %v195 = vmul.f32 %v190, %v175
    %v196 = vmul.f32 %v195, %v181
    %v197 = vmul.f32 %v186, %v175
    %v198 = vmul.f32 %v197, %v180
    %v199 = vsub.f32 %v196, %v198
    %v200 = vstv %s86
    %v201 = vmul.f32 %v200, %v199
    %v202 = vadd.f32 %v194, %v201
    %v203 = vstv %s87
    %v204 = vadd.f32 %v202, %v203
    %s205 = sadd.s32 0, 0
    %s206 = smul.u32 %s205, 128
    %v207 = vlaneseq
    %v208 = vand.u32 %v207, 127
    %v209 = vstv %s206
    %v210 = vadd.s32 %v209, %v208
    %vm211 = vcmp.lt.s32.totalorder %v210, 16
    %v212 = vsel %vm211, %v204, 0.0
    %213 = vst [vmem:[#allocation7] sm:$0x1] %v175
    %p214 = scmp.eq.s32.totalorder 0, 0
    // Predicated region
    $region26: #{tpu_custom_call.1} parent=1 // pred_check
      %p215 = pneg %p214
    $region27: #{tpu_custom_call.1} parent=1 // pred_check_branch
      %217 = sbr.rel (%p215) target = $region29
    $region28: #{tpu_custom_call.1} parent=1 // pred_region
      %218 = vst [vmem:[#allocation8] sm:$0x1] 0.0
    $region29: #{tpu_custom_call.1} parent=1 // pred_fallthru
      _
    %v219 = vld [vmem:[#allocation8] sm:$0x1]
    %v220 = vadd.f32 %v219, %v212
    %221 = vst [vmem:[#allocation8] sm:$0x1] %v220
    // Predicated region
    $region30: #{tpu_custom_call.1} parent=1 // pred_check
      _
    $region31: #{tpu_custom_call.1} parent=1 // pred_check_branch
      %223 = sbr.rel (0) target = $region33
    $region32: #{tpu_custom_call.1} parent=1 // pred_region
      %s224 = sadd.s32 0, 0
      %226 = vsyncadd [#allocation4], 0
      %s227 = scalar_lea.hbm %s4, %s224
      %s229 = sshll.u32 [#allocation7], 4
      %s230 = int_to_ptr.vmem [resolvable:$true] %s229
      %s231 = sshll.u32 %s227, 4
      %s232 = int_to_ptr.hbm [resolvable:$true] %s231
      %234 = dma.vmem_to_hbm [thread:$0]  %s230, 16, %s232, [#allocation4]
    $region33: #{tpu_custom_call.1} parent=1 // pred_fallthru
      _
    // Predicated region
    $region34: #{tpu_custom_call.1} parent=1 // pred_check
      _
    $region35: #{tpu_custom_call.1} parent=1 // pred_check_branch
      %236 = sbr.rel (0) target = $region37
    $region36: #{tpu_custom_call.1} parent=1 // pred_region
      %238 = vsyncadd [#allocation9], 0
      %s240 = sshll.u32 [#allocation8], 4
      %s241 = int_to_ptr.vmem [resolvable:$true] %s240
      %s242 = sshll.u32 %s5, 4
      %s243 = int_to_ptr.hbm [resolvable:$true] %s242
      %245 = dma.vmem_to_hbm [thread:$0]  %s241, 16, %s243, [#allocation9]
    $region37: #{tpu_custom_call.1} parent=1 // pred_fallthru
      _
    // Predicated region
    $region38: #{tpu_custom_call.1} parent=1 // pred_check
      _
    $region39: #{tpu_custom_call.1} parent=1 // pred_check_branch
      %247 = sbr.rel (0) target = $region41
    $region40: #{tpu_custom_call.1} parent=1 // pred_region
      %249 = dma.done [#allocation4], 16
    $region41: #{tpu_custom_call.1} parent=1 // pred_fallthru
      _
    // Predicated region
    $region42: #{tpu_custom_call.1} parent=1 // pred_check
      _
    $region43: #{tpu_custom_call.1} parent=1 // pred_check_branch
      %251 = sbr.rel (0) target = $region45
    $region44: #{tpu_custom_call.1} parent=1 // pred_region
      %253 = dma.done [#allocation9], 16
    $region45: #{tpu_custom_call.1} parent=1 // pred_fallthru
      _
    %254 = vsyncpa [#allocation3], 1
    %255 = vsyncpa [#allocation4], 1
    %256 = vsyncpa [#allocation9], 1
    %257 = vsyncpa [#allocation5], 1

</llo_original>
